<compile_context>
chip_gen: v7x
topology: tpu7x:2x2x1
jax: 0.10.0
libtpu: 0.0.40
codegen_flags: <defaults>
</compile_context>

<pallas_src>
import functools

import jax
import jax.numpy as jnp
from jax import lax
from jax.experimental import pallas as pl
from jax.experimental.pallas import tpu as pltpu

EPS = 1e-5
_MAX_TD = 512                    # lane tile for very wide feature dims (multiple of 128)
_TILE_CAP = 16 * 1024 * 1024     # upper bound on a single streamed tile


def _cdiv(a, b):
    return -(-a // b)


def _round_up(x, m):
    return ((x + m - 1) // m) * m


@functools.lru_cache(maxsize=None)
def _vmem_capacity_bytes():
    # Generation-aware VMEM: 128 MiB on v5e/v6e, 64 MiB per TensorCore on v7x.
    try:
        cap = int(getattr(pltpu.get_tpu_info(), "vmem_capacity_bytes", 0))
        if cap > 0:
            return cap
    except Exception:
        pass
    return 64 * 1024 * 1024      # conservative default (v7x-sized)


@functools.lru_cache(maxsize=None)
def _vmem_limit_bytes():
    # Scoped-VMEM budget handed to the compiler: ~48 MiB on v7x, ~96 MiB on v5e/v6e.
    return min((_vmem_capacity_bytes() * 3) // 4, 100 * 1024 * 1024)


def _sublane(dtype):
    return int(max(8, 32 // jnp.dtype(dtype).itemsize))


def _lane_tile(d):
    return d if d <= _MAX_TD else _MAX_TD


def _row_tile(n_rows, row_bytes, n_bufs, sub, cap_rows=None):
    """Row tile sized by bytes (mem-bound => big DMAs), capped by the VMEM budget,
    then rebalanced so the ragged tail tile is nearly full (no padding / slicing)."""
    per_tile = min(_TILE_CAP, _vmem_limit_bytes() // (n_bufs + 2))
    tn = per_tile // max(1, row_bytes)
    if cap_rows is not None:
        tn = min(tn, cap_rows)
    tn = max(sub, (tn // sub) * sub)
    if tn >= n_rows:
        return n_rows                    # single full-extent block (always layout-legal)
    n_tiles = _cdiv(n_rows, tn)
    return min(tn, max(sub, _round_up(_cdiv(n_rows, n_tiles), sub)))


def _param2d(v, d):
    return jnp.asarray(v, jnp.float32).reshape(1, d)


# ---------------------------------------------------------------------------
# Kernels
# ---------------------------------------------------------------------------
def _layer_norm_kernel(x_ref, g_ref, b_ref, o_ref):
    # Per-node stats over the feature (lane) axis; centered variance (x is in VMEM).
    x = x_ref[...].astype(jnp.float32)
    mean = jnp.mean(x, axis=-1, keepdims=True)
    xc = x - mean
    var = jnp.mean(xc * xc, axis=-1, keepdims=True)
    o_ref[...] = (xc * lax.rsqrt(var + EPS) * g_ref[...] + b_ref[...]).astype(o_ref.dtype)


def _feature_resident_kernel(x_ref, g_ref, b_ref, o_ref):
    # BatchNorm / InstanceNorm with the node block resident in VMEM (single HBM read).
    x = x_ref[...].astype(jnp.float32)
    mean = jnp.mean(x, axis=0, keepdims=True)
    xc = x - mean
    var = jnp.mean(xc * xc, axis=0, keepdims=True)
    o_ref[...] = (xc * (lax.rsqrt(var + EPS) * g_ref[...]) + b_ref[...]).astype(o_ref.dtype)


def _graph_resident_kernel(x_ref, a_ref, g_ref, b_ref, o_ref):
    # GraphNorm: gamma * (x - alpha*mean) / sqrt(E[(x - alpha*mean)^2] + eps) + beta.
    x = x_ref[...].astype(jnp.float32)
    mean = jnp.mean(x, axis=0, keepdims=True)
    sub = x - a_ref[...] * mean
    var = jnp.mean(sub * sub, axis=0, keepdims=True)
    o_ref[...] = (sub * (lax.rsqrt(var + EPS) * g_ref[...]) + b_ref[...]).astype(o_ref.dtype)


def _col_stats_kernel(x_ref, c_ref, s_ref, q_ref, *, n_rows, tn, blocks_per_chunk):
    # Streamed pass 1: shifted per-feature moments sum(x - c), sum((x - c)^2).
    # grid = (node chunk [parallel], feature tile [parallel], node tile [arbitrary]).
    i = pl.program_id(2)

    @pl.when(i == 0)
    def _():
        s_ref[...] = jnp.zeros_like(s_ref)
        q_ref[...] = jnp.zeros_like(q_ref)

    # Mask rows past N (ragged tail and clamped duplicate blocks contribute zero).
    row0 = (pl.program_id(0) * blocks_per_chunk + i) * tn
    rows = row0 + lax.broadcasted_iota(jnp.int32, x_ref.shape, 0)
    xc = jnp.where(rows < n_rows, x_ref[...].astype(jnp.float32) - c_ref[...], 0.0)
    # (1, td) partials broadcast into the (8, td) accumulator block (all rows identical).
    s_ref[...] += jnp.sum(xc, axis=0, keepdims=True)
    q_ref[...] += jnp.sum(xc * xc, axis=0, keepdims=True)


def _fma_apply_kernel(x_ref, scale_ref, shift_ref, o_ref):
    # Streamed pass 2: out = x * scale + shift (stats prefolded into scale/shift).
    o_ref[...] = (x_ref[...].astype(jnp.float32) * scale_ref[...]
                  + shift_ref[...]).astype(o_ref.dtype)


# ---------------------------------------------------------------------------
# Wrappers (pallas_call plumbing)
# ---------------------------------------------------------------------------
def layer_norm(x, gamma, beta):
    N, D = x.shape
    sub = _sublane(x.dtype)
    tn = _row_tile(N, D * jnp.dtype(x.dtype).itemsize, n_bufs=4, sub=sub)
    return pl.pallas_call(
        _layer_norm_kernel,
        out_shape=jax.ShapeDtypeStruct((N, D), x.dtype),
        grid_spec=pl.GridSpec(
            grid=(_cdiv(N, tn),),
            in_specs=[pl.BlockSpec((tn, D), lambda i: (i, 0)),
                      pl.BlockSpec((1, D), lambda i: (0, 0)),
                      pl.BlockSpec((1, D), lambda i: (0, 0))],
            out_specs=pl.BlockSpec((tn, D), lambda i: (i, 0)),
        ),
        compiler_params=pltpu.CompilerParams(
            dimension_semantics=("parallel",),
            vmem_limit_bytes=_vmem_limit_bytes()),
    )(x, _param2d(gamma, D), _param2d(beta, D))


def _column_norm(x, resident_kernel, finalize, params,
                 force_streamed=False, max_tile_rows=None):
    """Per-feature (column-wise) normalization.

    Fast path: whole node block resident in VMEM, single pallas_call over D tiles.
    Fallback: streamed two-pass (chunked shifted-moment stats, then parallel FMA apply).
    """
    N, D = x.shape
    itemsize = jnp.dtype(x.dtype).itemsize
    sub = _sublane(x.dtype)
    td = _lane_tile(D)
    nd = _cdiv(D, td)
    params2d = [_param2d(p, D) for p in params]

    # ---- VMEM-resident single-pass fast path -------------------------------
    bufs = 2 if nd > 1 else 1                        # block double-buffering if D is tiled
    resident_bytes = N * td * 4 * (2 * bufs + 2)     # x/out blocks + f32 temporaries
    if (not force_streamed) and resident_bytes <= _vmem_limit_bytes():
        return pl.pallas_call(
            resident_kernel,
            out_shape=jax.ShapeDtypeStruct((N, D), x.dtype),
            grid_spec=pl.GridSpec(
                grid=(nd,),
                in_specs=[pl.BlockSpec((N, td), lambda j: (0, j))]
                         + [pl.BlockSpec((1, td), lambda j: (0, j))] * len(params2d),
                out_specs=pl.BlockSpec((N, td), lambda j: (0, j)),
            ),
            compiler_params=pltpu.CompilerParams(
                dimension_semantics=("parallel",),
                vmem_limit_bytes=_vmem_limit_bytes()),
        )(x, *params2d)

    # ---- Streamed two-pass path (graphs that do not fit VMEM) --------------
    # Pass 1: shifted per-feature moments; node axis split into 2 parallel chunks so
    # both TensorCores (v7x megacore) share the reduction.  Larger tile (no output stream).
    tn1 = _row_tile(N, td * itemsize, n_bufs=2, sub=sub, cap_rows=max_tile_rows)
    nt = _cdiv(N, tn1)
    n_chunks = 2 if nt >= 2 else 1
    bpc = _cdiv(nt, n_chunks)
    c_row = x[0:1, :].astype(jnp.float32)            # per-feature shift (anti-cancellation)
    stats_kernel = functools.partial(_col_stats_kernel, n_rows=N, tn=tn1,
                                     blocks_per_chunk=bpc)
    psum, psq = pl.pallas_call(
        stats_kernel,
        out_shape=(jax.ShapeDtypeStruct((8 * n_chunks, D), jnp.float32),
                   jax.ShapeDtypeStruct((8 * n_chunks, D), jnp.float32)),
        grid_spec=pl.GridSpec(
            grid=(n_chunks, nd, bpc),
            in_specs=[
                pl.BlockSpec((tn1, td),
                             lambda c, j, i: (jnp.minimum(c * bpc + i, nt - 1), j)),
                pl.BlockSpec((1, td), lambda c, j, i: (0, j)),
            ],
            out_specs=(pl.BlockSpec((8, td), lambda c, j, i: (c, j)),
                       pl.BlockSpec((8, td), lambda c, j, i: (c, j))),
        ),
        compiler_params=pltpu.CompilerParams(
            dimension_semantics=("parallel", "parallel", "arbitrary"),
            vmem_limit_bytes=_vmem_limit_bytes()),
    )(x, c_row)

    # Finalize on tiny (1, D) arrays in plain JAX: exact shifted moments -> scale/shift.
    s = jnp.sum(psum[0::8], axis=0, keepdims=True)
    q = jnp.sum(psq[0::8], axis=0, keepdims=True)
    mean = c_row + s / N
    var_x = jnp.maximum(q / N - (s / N) ** 2, 0.0)
    scale, shift = finalize(mean, var_x, *params2d)

    # Pass 2: fully parallel fused multiply-add over (N, D) tiles.
    tn2 = _row_tile(N, td * itemsize, n_bufs=4, sub=sub, cap_rows=max_tile_rows)
    return pl.pallas_call(
        _fma_apply_kernel,
        out_shape=jax.ShapeDtypeStruct((N, D), x.dtype),
        grid_spec=pl.GridSpec(
            grid=(_cdiv(N, tn2), nd),
            in_specs=[pl.BlockSpec((tn2, td), lambda i, j: (i, j)),
                      pl.BlockSpec((1, td), lambda i, j: (0, j)),
                      pl.BlockSpec((1, td), lambda i, j: (0, j))],
            out_specs=pl.BlockSpec((tn2, td), lambda i, j: (i, j)),
        ),
        compiler_params=pltpu.CompilerParams(
            dimension_semantics=("parallel", "parallel"),
            vmem_limit_bytes=_vmem_limit_bytes()),
    )(x, scale, shift)


def _feature_finalize(mean, var_x, gamma, beta):
    scale = lax.rsqrt(var_x + EPS) * gamma
    return scale, beta - mean * scale


def _graph_finalize(mean, var_x, alpha, gamma, beta):
    # E[(x - alpha*mean)^2] == Var(x) + (mean*(1-alpha))^2
    var_g = var_x + (mean * (1.0 - alpha)) ** 2
    scale = lax.rsqrt(var_g + EPS) * gamma
    return scale, beta - alpha * mean * scale


def feature_norm(x, gamma, beta, force_streamed=False, max_tile_rows=None):
    # Per-feature stats over all nodes (BatchNorm; InstanceNorm for a single graph).
    # TODO(synk): PyG InstanceNorm with a multi-graph `batch` vector normalizes per graph;
    # this implements the single-graph semantics (matches the reference used here).
    return _column_norm(x, _feature_resident_kernel, _feature_finalize, [gamma, beta],
                        force_streamed=force_streamed, max_tile_rows=max_tile_rows)


def graph_norm(x, alpha, gamma, beta, force_streamed=False, max_tile_rows=None):
    return _column_norm(x, _graph_resident_kernel, _graph_finalize, [alpha, gamma, beta],
                        force_streamed=force_streamed, max_tile_rows=max_tile_rows)


def linear_norm(x):
    # Identity: plain passthrough (a Pallas copy would only add an HBM round trip).
    return x


# ---------------------------------------------------------------------------
# NormPool module (JAX side)
# ---------------------------------------------------------------------------
class NormPool:
    candidate_list = ["GraphNorm", "InstanceNorm", "LayerNorm", "BatchNorm", "LinearNorm"]

    def __init__(self, input_dim=128, key=None):
        if key is None:
            key = jax.random.PRNGKey(0)
        k = jax.random.split(key, 7)
        D = input_dim
        # deterministic synthetic parameters (shapes from the torch module's __init__)
        self.gn_alpha = 1.0 + 0.1 * jax.random.normal(k[0], (D,), jnp.float32)  # mean_scale
        self.gn_gamma = 1.0 + 0.1 * jax.random.normal(k[1], (D,), jnp.float32)
        self.gn_beta = 0.1 * jax.random.normal(k[2], (D,), jnp.float32)
        self.ln_gamma = 1.0 + 0.1 * jax.random.normal(k[3], (D,), jnp.float32)
        self.ln_beta = 0.1 * jax.random.normal(k[4], (D,), jnp.float32)
        self.bn_gamma = 1.0 + 0.1 * jax.random.normal(k[5], (D,), jnp.float32)
        self.bn_beta = 0.1 * jax.random.normal(k[6], (D,), jnp.float32)
        # InstanceNorm: PyG default affine=False
        self.in_gamma = jnp.ones((D,), jnp.float32)
        self.in_beta = jnp.zeros((D,), jnp.float32)
        self.norm_operation = None  # set via get_candidate, as in the torch module

    def get_candidate(self, candidate_name):
        if candidate_name == "GraphNorm":
            op = functools.partial(graph_norm, alpha=self.gn_alpha,
                                   gamma=self.gn_gamma, beta=self.gn_beta)
        elif candidate_name == "InstanceNorm":
            op = functools.partial(feature_norm, gamma=self.in_gamma, beta=self.in_beta)
        elif candidate_name == "LayerNorm":
            op = functools.partial(layer_norm, gamma=self.ln_gamma, beta=self.ln_beta)
        elif candidate_name == "BatchNorm":
            op = functools.partial(feature_norm, gamma=self.bn_gamma, beta=self.bn_beta)
        elif candidate_name == "LinearNorm":
            op = linear_norm
        else:
            raise Exception("Sorry current version don't Support this default graph norm",
                            candidate_name)
        return op

    def forward(self, x):
        return self.norm_operation(x)


# ---------------------------------------------------------------------------
# Pure-JAX references for correctness checks
# ---------------------------------------------------------------------------
def _ref(pool, name, x):
    x = x.astype(jnp.float32)
    if name == "GraphNorm":
        mean = jnp.mean(x, axis=0, keepdims=True)
        out = x - mean * pool.gn_alpha[None, :]
        var = jnp.mean(out * out, axis=0, keepdims=True)
        return pool.gn_gamma[None, :] * out * lax.rsqrt(var + EPS) + pool.gn_beta[None, :]
    if name in ("InstanceNorm", "BatchNorm"):
        g, b = ((pool.in_gamma, pool.in_beta) if name == "InstanceNorm"
                else (pool.bn_gamma, pool.bn_beta))
        mean = jnp.mean(x, axis=0, keepdims=True)
        var = jnp.mean((x - mean) ** 2, axis=0, keepdims=True)
        return (x - mean) * lax.rsqrt(var + EPS) * g[None, :] + b[None, :]
    if name == "LayerNorm":
        mean = jnp.mean(x, axis=-1, keepdims=True)
        var = jnp.mean((x - mean) ** 2, axis=-1, keepdims=True)
        return (x - mean) * lax.rsqrt(var + EPS) * pool.ln_gamma[None, :] + pool.ln_beta[None, :]
    return x  # LinearNorm


if __name__ == "__main__":
    key = jax.random.PRNGKey(0)
    kx, kp = jax.random.split(key)
    N, D = 200, 128  # (num_nodes, input_dim) — input_dim matches the module default
    x = jax.random.normal(kx, (N, D), dtype=jnp.float32)

    pool = NormPool(input_dim=D, key=kp)

    ok = True
    for name in pool.candidate_list:
        pool.norm_operation = pool.get_candidate(name)
        y = jax.block_until_ready(pool.forward(x))
        y_ref = _ref(pool, name, x)
        if y.shape != x.shape or not jnp.allclose(y, y_ref, atol=1e-4, rtol=1e-4):
            ok = False
            print(f"MISMATCH in {name}")

    # Also exercise the streamed (chunked-stats + FMA-apply) path at small size:
    # tile of 56 hits the masked ragged tail; tile of 40 also hits the clamped extra block.
    y = jax.block_until_ready(
        feature_norm(x, pool.bn_gamma, pool.bn_beta, force_streamed=True, max_tile_rows=56))
    if not jnp.allclose(y, _ref(pool, "BatchNorm", x), atol=1e-4, rtol=1e-4):
        ok = False
        print("MISMATCH in streamed BatchNorm")
    y = jax.block_until_ready(
        graph_norm(x, pool.gn_alpha, pool.gn_gamma, pool.gn_beta,
                   force_streamed=True, max_tile_rows=40))
    if not jnp.allclose(y, _ref(pool, "GraphNorm", x), atol=1e-4, rtol=1e-4):
        ok = False
        print("MISMATCH in streamed GraphNorm")

    if ok:
        print("KERNEL_OK")
</pallas_src>

<mosaic_0001>
module attributes {stable_mosaic.version = 11 : i64} {
  func.func @_graph_resident_kernel(%arg0: i32, %arg1: memref<200x128xf32, #tpu.memory_space<vmem>>, %arg2: memref<1x128xf32, #tpu.memory_space<vmem>>, %arg3: memref<1x128xf32, #tpu.memory_space<vmem>>, %arg4: memref<1x128xf32, #tpu.memory_space<vmem>>, %arg5: memref<200x128xf32, #tpu.memory_space<vmem>>) attributes {dimension_semantics = [#tpu.dimension_semantics<parallel>], iteration_bounds = array<i64: 1>, scalar_prefetch = 0 : i64, scratch_operands = 0 : i64, tpu.core_type = #tpu.core_type<tc>, window_params = [{transform_indices = @transform_0, window_bounds = array<i64: 200, 128>}, {transform_indices = @transform_1, window_bounds = array<i64: 1, 128>}, {transform_indices = @transform_2, window_bounds = array<i64: 1, 128>}, {transform_indices = @transform_3, window_bounds = array<i64: 1, 128>}, {transform_indices = @transform_4, window_bounds = array<i64: 200, 128>}]} {
    %c0 = arith.constant 0 : index
    %c0_0 = arith.constant 0 : index
    %0 = vector.load %arg1[%c0, %c0_0] : memref<200x128xf32, #tpu.memory_space<vmem>>, vector<200x128xf32>
    %cst = arith.constant dense<0.000000e+00> : vector<128xf32>
    %1 = vector.multi_reduction <add>, %0, %cst [0] : vector<200x128xf32> to vector<128xf32>
    %2 = vector.shape_cast %1 : vector<128xf32> to vector<1x128xf32>
    %cst_1 = arith.constant 2.000000e+02 : f32
    %3 = vector.broadcast %cst_1 : f32 to vector<1x128xf32>
    %4 = arith.divf %2, %3 : vector<1x128xf32>
    %c0_2 = arith.constant 0 : index
    %c0_3 = arith.constant 0 : index
    %5 = vector.load %arg2[%c0_2, %c0_3] : memref<1x128xf32, #tpu.memory_space<vmem>>, vector<1x128xf32>
    %6 = arith.mulf %5, %4 : vector<1x128xf32>
    %7 = vector.broadcast %6 : vector<1x128xf32> to vector<200x128xf32>
    %8 = arith.subf %0, %7 : vector<200x128xf32>
    %9 = arith.mulf %8, %8 : vector<200x128xf32>
    %cst_4 = arith.constant dense<0.000000e+00> : vector<128xf32>
    %10 = vector.multi_reduction <add>, %9, %cst_4 [0] : vector<200x128xf32> to vector<128xf32>
    %11 = vector.shape_cast %10 : vector<128xf32> to vector<1x128xf32>
    %cst_5 = arith.constant 2.000000e+02 : f32
    %12 = vector.broadcast %cst_5 : f32 to vector<1x128xf32>
    %13 = arith.divf %11, %12 : vector<1x128xf32>
    %cst_6 = arith.constant 9.99999974E-6 : f32
    %14 = vector.broadcast %cst_6 : f32 to vector<1x128xf32>
    %15 = arith.addf %13, %14 : vector<1x128xf32>
    %16 = math.rsqrt %15 : vector<1x128xf32>
    %c0_7 = arith.constant 0 : index
    %c0_8 = arith.constant 0 : index
    %17 = vector.load %arg3[%c0_7, %c0_8] : memref<1x128xf32, #tpu.memory_space<vmem>>, vector<1x128xf32>
    %18 = arith.mulf %16, %17 : vector<1x128xf32>
    %19 = vector.broadcast %18 : vector<1x128xf32> to vector<200x128xf32>
    %20 = arith.mulf %8, %19 : vector<200x128xf32>
    %c0_9 = arith.constant 0 : index
    %c0_10 = arith.constant 0 : index
    %21 = vector.load %arg4[%c0_9, %c0_10] : memref<1x128xf32, #tpu.memory_space<vmem>>, vector<1x128xf32>
    %22 = vector.broadcast %21 : vector<1x128xf32> to vector<200x128xf32>
    %23 = arith.addf %20, %22 : vector<200x128xf32>
    %c0_11 = arith.constant 0 : index
    %c0_12 = arith.constant 0 : index
    %24 = vector.load %arg5[%c0_11, %c0_12] : memref<200x128xf32, #tpu.memory_space<vmem>>, vector<200x128xf32>
    tpu.vector_store %arg5[%c0_11, %c0_12], %23 {strides = array<i32>} : memref<200x128xf32, #tpu.memory_space<vmem>>, vector<200x128xf32>,
    return
  }
  func.func @transform_0(%arg0: i32) -> (i32, i32) {
    %c0_i32 = arith.constant 0 : i32
    %c0_i32_0 = arith.constant 0 : i32
    return %c0_i32, %arg0 : i32, i32
  }
  func.func @transform_1(%arg0: i32) -> (i32, i32) {
    %c0_i32 = arith.constant 0 : i32
    %c0_i32_0 = arith.constant 0 : i32
    return %c0_i32, %arg0 : i32, i32
  }
  func.func @transform_2(%arg0: i32) -> (i32, i32) {
    %c0_i32 = arith.constant 0 : i32
    %c0_i32_0 = arith.constant 0 : i32
    return %c0_i32, %arg0 : i32, i32
  }
  func.func @transform_3(%arg0: i32) -> (i32, i32) {
    %c0_i32 = arith.constant 0 : i32
    %c0_i32_0 = arith.constant 0 : i32
    return %c0_i32, %arg0 : i32, i32
  }
  func.func @transform_4(%arg0: i32) -> (i32, i32) {
    %c0_i32 = arith.constant 0 : i32
    %c0_i32_0 = arith.constant 0 : i32
    return %c0_i32, %arg0 : i32, i32
  }
}

</mosaic_0001>

<llo_original>
// kernel: tpu_custom_call.1
$region0: #{tpu_custom_call.1}
  #allocation0 [shape = 'u32[]', space=smem, size = 0x4, offset = 0x4, fixed_abs, tag = 'smem constant byte address 0x4 - core index']
  #allocation1 [shape = 'u32[144,128]{1,0:T(1,128)}', space=vmem, size = 0x12000, scoped, tag = 'internal scratch']
  %s0 = inlined_call_operand.hbm [shape: f32[200,128], index: 0, kind: input, shape index: {}]
  %s1 = inlined_call_operand.vmem [shape: f32[1,128], index: 1, kind: input, shape index: {}]
  %s2 = inlined_call_operand.vmem [shape: f32[1,128], index: 2, kind: input, shape index: {}]
  %s3 = inlined_call_operand.vmem [shape: f32[1,128], index: 3, kind: input, shape index: {}]
  %s4 = inlined_call_operand.hbm [shape: f32[200,128], index: 4, kind: output, shape index: {}]
  %s5 = sld [smem:[#allocation0]]
  $region30: #{tpu_custom_call.1} parent=0
    _
  %s7 = ssub.s32 1, %s5
  %s8 = scalar_select 0, %s7, %s5
  $region1: #{tpu_custom_call.1} parent=0
    #allocation2 [shape = 'u8[102400]{0}', space=vmem, size = 0x19000, scoped, tag = 'input window, operand 0, single buffered']
    #allocation3 [shape = 's32[1]{0}', space=sflag, size = 0x4, scoped, tag = 'scoped memory for tpu_custom_call.1']
    #allocation4 [shape = 's32[1]{0}', space=sflag, size = 0x4, scoped, tag = 'scoped memory for tpu_custom_call.1']
    #allocation5 [shape = 'u8[102400]{0}', space=vmem, size = 0x19000, scoped, tag = 'output window, operand 0, single buffered']
    %9 = vsyncpa [#allocation3], 0
    %10 = vsyncpa [#allocation4], 0
    // Predicated region
    $region2: #{tpu_custom_call.1} parent=1 // pred_check
      _
    $region3: #{tpu_custom_call.1} parent=1 // pred_check_branch
      %12 = sbr.rel (0) target = $region5
    $region4: #{tpu_custom_call.1} parent=1 // pred_region
      %s14 = ssub.s32 3200, 3200
      %15 = vsyncadd [#allocation3], %s14
      %s16 = sshll.u32 [#allocation2], 4
      %s17 = int_to_ptr.vmem [resolvable:$true] %s16
      %22 = dma.hbm_to_vmem [thread:$0]  %s0, 3200, %s17, [#allocation3], 128, 128, 8
    $region5: #{tpu_custom_call.1} parent=1 // pred_fallthru
      _
    // Predicated region
    $region6: #{tpu_custom_call.1} parent=1 // pred_check
      _
    $region7: #{tpu_custom_call.1} parent=1 // pred_check_branch
      %24 = sbr.rel (0) target = $region9
    $region8: #{tpu_custom_call.1} parent=1 // pred_region
      _
    $region9: #{tpu_custom_call.1} parent=1 // pred_fallthru
      _
    // Predicated region
    $region10: #{tpu_custom_call.1} parent=1 // pred_check
      _
    $region11: #{tpu_custom_call.1} parent=1 // pred_check_branch
      %26 = sbr.rel (0) target = $region13
    $region12: #{tpu_custom_call.1} parent=1 // pred_region
      _
    $region13: #{tpu_custom_call.1} parent=1 // pred_fallthru
      _
    // Predicated region
    $region14: #{tpu_custom_call.1} parent=1 // pred_check
      _
    $region15: #{tpu_custom_call.1} parent=1 // pred_check_branch
      %28 = sbr.rel (0) target = $region17
    $region16: #{tpu_custom_call.1} parent=1 // pred_region
      _
    $region17: #{tpu_custom_call.1} parent=1 // pred_fallthru
      _
    // Predicated region
    $region18: #{tpu_custom_call.1} parent=1 // pred_check
      _
    $region19: #{tpu_custom_call.1} parent=1 // pred_check_branch
      %30 = sbr.rel (0) target = $region21
    $region20: #{tpu_custom_call.1} parent=1 // pred_region
      %31 = dma.done [#allocation3], 3200
    $region21: #{tpu_custom_call.1} parent=1 // pred_fallthru
      _
    %v32 = vld [vmem:[#allocation2] sm:$0xff]
    %v33 = vld [vmem:[#allocation2 + $0x8] sm:$0xff]
    %v34 = vld [vmem:[#allocation2 + $0x10] sm:$0xff]
    %v35 = vld [vmem:[#allocation2 + $0x18] sm:$0xff]
    %v36 = vld [vmem:[#allocation2 + $0x20] sm:$0xff]
    %v37 = vld [vmem:[#allocation2 + $0x28] sm:$0xff]
    %v38 = vld [vmem:[#allocation2 + $0x30] sm:$0xff]
    %v39 = vld [vmem:[#allocation2 + $0x38] sm:$0xff]
    %v40 = vld [vmem:[#allocation2 + $0x40] sm:$0xff]
    %v41 = vld [vmem:[#allocation2 + $0x48] sm:$0xff]
    %v42 = vld [vmem:[#allocation2 + $0x50] sm:$0xff]
    %v43 = vld [vmem:[#allocation2 + $0x58] sm:$0xff]
    %v44 = vld [vmem:[#allocation2 + $0x60] sm:$0xff]
    %v45 = vld [vmem:[#allocation2 + $0x68] sm:$0xff]
    %v46 = vld [vmem:[#allocation2 + $0x70] sm:$0xff]
    %v47 = vld [vmem:[#allocation2 + $0x78] sm:$0xff]
    %v48 = vld [vmem:[#allocation2 + $0x80] sm:$0xff]
    %v49 = vld [vmem:[#allocation2 + $0x88] sm:$0xff]
    %v50 = vld [vmem:[#allocation2 + $0x90] sm:$0xff]
    %v51 = vld [vmem:[#allocation2 + $0x98] sm:$0xff]
    %v52 = vld [vmem:[#allocation2 + $0xa0] sm:$0xff]
    %v53 = vld [vmem:[#allocation2 + $0xa8] sm:$0xff]
    %v54 = vld [vmem:[#allocation2 + $0xb0] sm:$0xff]
    %v55 = vld [vmem:[#allocation2 + $0xb8] sm:$0xff]
    %v56 = vld [vmem:[#allocation2 + $0xc0] sm:$0xff]
    %v57 = vadd.f32 %v32, %v33
    %v58 = vadd.f32 %v57, %v34
    %v59 = vadd.f32 %v58, %v35
    %v60 = vadd.f32 %v59, %v36
    %v61 = vadd.f32 %v60, %v37
    %v62 = vadd.f32 %v61, %v38
    %v63 = vadd.f32 %v62, %v39
    %v64 = vadd.f32 %v63, %v40
    %v65 = vadd.f32 %v64, %v41
    %v66 = vadd.f32 %v65, %v42
    %v67 = vadd.f32 %v66, %v43
    %v68 = vadd.f32 %v67, %v44
    %v69 = vadd.f32 %v68, %v45
    %v70 = vadd.f32 %v69, %v46
    %v71 = vadd.f32 %v70, %v47
    %v72 = vadd.f32 %v71, %v48
    %v73 = vadd.f32 %v72, %v49
    %v74 = vadd.f32 %v73, %v50
    %v75 = vadd.f32 %v74, %v51
    %v76 = vadd.f32 %v75, %v52
    %v77 = vadd.f32 %v76, %v53
    %v78 = vadd.f32 %v77, %v54
    %v79 = vadd.f32 %v78, %v55
    %v80 = vadd.f32 %v79, %v56
    %v81 = vrot.slane %v80, 4
    %v82 = vadd.f32 %v80, %v81
    %v83 = vrot.slane %v82, 2
    %v84 = vadd.f32 %v82, %v83
    %v85 = vrot.slane %v84, 1
    %v86 = vadd.f32 %v84, %v85
    %v87 = vrcp.pop 200.0
    %v88 = vmul.f32 %v86, %v87
    %v89 = vld [vmem:[%s1] sm:$0x1]
    %v90 = vmul.f32 %v89, %v88
    %v92 = vlaneseq
    %v93 = vshrl.u32 %v92, 7
    %v94 = vsub.s32 0, %v93
    %v95 = vrot.slane %v90, %v94
    %v97 = vsub.f32 %v32, %v95
    %v98 = vsub.f32 %v33, %v95
    %v99 = vsub.f32 %v34, %v95
    %v100 = vsub.f32 %v35, %v95
    %v101 = vsub.f32 %v36, %v95
    %v102 = vsub.f32 %v37, %v95
    %v103 = vsub.f32 %v38, %v95
    %v104 = vsub.f32 %v39, %v95
    %v105 = vsub.f32 %v40, %v95
    %v106 = vsub.f32 %v41, %v95
    %v107 = vsub.f32 %v42, %v95
    %v108 = vsub.f32 %v43, %v95
    %v109 = vsub.f32 %v44, %v95
    %v110 = vsub.f32 %v45, %v95
    %v111 = vsub.f32 %v46, %v95
    %v112 = vsub.f32 %v47, %v95
    %v113 = vsub.f32 %v48, %v95
    %v114 = vsub.f32 %v49, %v95
    %v115 = vsub.f32 %v50, %v95
    %v116 = vsub.f32 %v51, %v95
    %v117 = vsub.f32 %v52, %v95
    %v118 = vsub.f32 %v53, %v95
    %v119 = vsub.f32 %v54, %v95
    %v120 = vsub.f32 %v55, %v95
    %v121 = vsub.f32 %v56, %v95
    %v122 = vmul.f32 %v97, %v97
    %v123 = vmul.f32 %v98, %v98
    %v124 = vmul.f32 %v99, %v99
    %v125 = vmul.f32 %v100, %v100
    %v126 = vmul.f32 %v101, %v101
    %v127 = vmul.f32 %v102, %v102
    %v128 = vmul.f32 %v103, %v103
    %v129 = vmul.f32 %v104, %v104
    %v130 = vmul.f32 %v105, %v105
    %v131 = vmul.f32 %v106, %v106
    %v132 = vmul.f32 %v107, %v107
    %v133 = vmul.f32 %v108, %v108
    %v134 = vmul.f32 %v109, %v109
    %v135 = vmul.f32 %v110, %v110
    %v136 = vmul.f32 %v111, %v111
    %v137 = vmul.f32 %v112, %v112
    %v138 = vmul.f32 %v113, %v113
    %v139 = vmul.f32 %v114, %v114
    %v140 = vmul.f32 %v115, %v115
    %v141 = vmul.f32 %v116, %v116
    %v142 = vmul.f32 %v117, %v117
    %v143 = vmul.f32 %v118, %v118
    %v144 = vmul.f32 %v119, %v119
    %v145 = vmul.f32 %v120, %v120
    %v146 = vmul.f32 %v121, %v121
    %v147 = vadd.f32 %v122, %v123
    %v148 = vadd.f32 %v147, %v124
    %v149 = vadd.f32 %v148, %v125
    %v150 = vadd.f32 %v149, %v126
    %v151 = vadd.f32 %v150, %v127
    %v152 = vadd.f32 %v151, %v128
    %v153 = vadd.f32 %v152, %v129
    %v154 = vadd.f32 %v153, %v130
    %v155 = vadd.f32 %v154, %v131
    %v156 = vadd.f32 %v155, %v132
    %v157 = vadd.f32 %v156, %v133
    %v158 = vadd.f32 %v157, %v134
    %v159 = vadd.f32 %v158, %v135
    %v160 = vadd.f32 %v159, %v136
    %v161 = vadd.f32 %v160, %v137
    %v162 = vadd.f32 %v161, %v138
    %v163 = vadd.f32 %v162, %v139
    %v164 = vadd.f32 %v163, %v140
    %v165 = vadd.f32 %v164, %v141
    %v166 = vadd.f32 %v165, %v142
    %v167 = vadd.f32 %v166, %v143
    %v168 = vadd.f32 %v167, %v144
    %v169 = vadd.f32 %v168, %v145
    %v170 = vadd.f32 %v169, %v146
    %v171 = vrot.slane %v170, 4
    %v172 = vadd.f32 %v170, %v171
    %v173 = vrot.slane %v172, 2
    %v174 = vadd.f32 %v172, %v173
    %v175 = vrot.slane %v174, 1
    %v176 = vadd.f32 %v174, %v175
    %v177 = vmul.f32 %v176, %v87
    %v178 = vadd.f32 %v177, 1e-05
    %v179 = vrsqrt.pop %v178
    %v180 = vld [vmem:[%s2] sm:$0x1]
    %v181 = vmul.f32 %v179, %v180
    %v182 = vlaneseq
    %v183 = vshrl.u32 %v182, 7
    %v184 = vsub.s32 0, %v183
    %v185 = vrot.slane %v181, %v184
    %v186 = vmul.f32 %v97, %v185
    %v187 = vmul.f32 %v98, %v185
    %v188 = vmul.f32 %v99, %v185
    %v189 = vmul.f32 %v100, %v185
    %v190 = vmul.f32 %v101, %v185
    %v191 = vmul.f32 %v102, %v185
    %v192 = vmul.f32 %v103, %v185
    %v193 = vmul.f32 %v104, %v185
    %v194 = vmul.f32 %v105, %v185
    %v195 = vmul.f32 %v106, %v185
    %v196 = vmul.f32 %v107, %v185
    %v197 = vmul.f32 %v108, %v185
    %v198 = vmul.f32 %v109, %v185
    %v199 = vmul.f32 %v110, %v185
    %v200 = vmul.f32 %v111, %v185
    %v201 = vmul.f32 %v112, %v185
    %v202 = vmul.f32 %v113, %v185
    %v203 = vmul.f32 %v114, %v185
    %v204 = vmul.f32 %v115, %v185
    %v205 = vmul.f32 %v116, %v185
    %v206 = vmul.f32 %v117, %v185
    %v207 = vmul.f32 %v118, %v185
    %v208 = vmul.f32 %v119, %v185
    %v209 = vmul.f32 %v120, %v185
    %v210 = vmul.f32 %v121, %v185
    %v211 = vld [vmem:[%s3] sm:$0x1]
    %v213 = vlaneseq
    %v214 = vshrl.u32 %v213, 7
    %v215 = vsub.s32 0, %v214
    %v216 = vrot.slane %v211, %v215
    %v218 = vadd.f32 %v186, %v216
    %v219 = vadd.f32 %v187, %v216
    %v220 = vadd.f32 %v188, %v216
    %v221 = vadd.f32 %v189, %v216
    %v222 = vadd.f32 %v190, %v216
    %v223 = vadd.f32 %v191, %v216
    %v224 = vadd.f32 %v192, %v216
    %v225 = vadd.f32 %v193, %v216
    %v226 = vadd.f32 %v194, %v216
    %v227 = vadd.f32 %v195, %v216
    %v228 = vadd.f32 %v196, %v216
    %v229 = vadd.f32 %v197, %v216
    %v230 = vadd.f32 %v198, %v216
    %v231 = vadd.f32 %v199, %v216
    %v232 = vadd.f32 %v200, %v216
    %v233 = vadd.f32 %v201, %v216
    %v234 = vadd.f32 %v202, %v216
    %v235 = vadd.f32 %v203, %v216
    %v236 = vadd.f32 %v204, %v216
    %v237 = vadd.f32 %v205, %v216
    %v238 = vadd.f32 %v206, %v216
    %v239 = vadd.f32 %v207, %v216
    %v240 = vadd.f32 %v208, %v216
    %v241 = vadd.f32 %v209, %v216
    %v242 = vadd.f32 %v210, %v216
    %243 = vst [vmem:[#allocation5] sm:$0xff] %v218
    %244 = vst [vmem:[#allocation5 + $0x8] sm:$0xff] %v219
    %245 = vst [vmem:[#allocation5 + $0x10] sm:$0xff] %v220
    %246 = vst [vmem:[#allocation5 + $0x18] sm:$0xff] %v221
    %247 = vst [vmem:[#allocation5 + $0x20] sm:$0xff] %v222
    %248 = vst [vmem:[#allocation5 + $0x28] sm:$0xff] %v223
    %249 = vst [vmem:[#allocation5 + $0x30] sm:$0xff] %v224
    %250 = vst [vmem:[#allocation5 + $0x38] sm:$0xff] %v225
    %251 = vst [vmem:[#allocation5 + $0x40] sm:$0xff] %v226
    %252 = vst [vmem:[#allocation5 + $0x48] sm:$0xff] %v227
    %253 = vst [vmem:[#allocation5 + $0x50] sm:$0xff] %v228
    %254 = vst [vmem:[#allocation5 + $0x58] sm:$0xff] %v229
    %255 = vst [vmem:[#allocation5 + $0x60] sm:$0xff] %v230
    %256 = vst [vmem:[#allocation5 + $0x68] sm:$0xff] %v231
    %257 = vst [vmem:[#allocation5 + $0x70] sm:$0xff] %v232
    %258 = vst [vmem:[#allocation5 + $0x78] sm:$0xff] %v233
    %259 = vst [vmem:[#allocation5 + $0x80] sm:$0xff] %v234
    %260 = vst [vmem:[#allocation5 + $0x88] sm:$0xff] %v235
    %261 = vst [vmem:[#allocation5 + $0x90] sm:$0xff] %v236
    %262 = vst [vmem:[#allocation5 + $0x98] sm:$0xff] %v237
    %263 = vst [vmem:[#allocation5 + $0xa0] sm:$0xff] %v238
    %264 = vst [vmem:[#allocation5 + $0xa8] sm:$0xff] %v239
    %265 = vst [vmem:[#allocation5 + $0xb0] sm:$0xff] %v240
    %266 = vst [vmem:[#allocation5 + $0xb8] sm:$0xff] %v241
    %267 = vst [vmem:[#allocation5 + $0xc0] sm:$0xff] %v242
    // Predicated region
    $region22: #{tpu_custom_call.1} parent=1 // pred_check
      _
    $region23: #{tpu_custom_call.1} parent=1 // pred_check_branch
      %269 = sbr.rel (0) target = $region25
    $region24: #{tpu_custom_call.1} parent=1 // pred_region
      %s271 = ssub.s32 3200, 3200
      %272 = vsyncadd [#allocation4], %s271
      %s273 = sshll.u32 [#allocation5], 4
      %s274 = int_to_ptr.vmem [resolvable:$true] %s273
      %279 = dma.vmem_to_hbm [thread:$0]  %s274, 3200, %s4, [#allocation4], 128, 128, 8
    $region25: #{tpu_custom_call.1} parent=1 // pred_fallthru
      _
    // Predicated region
    $region26: #{tpu_custom_call.1} parent=1 // pred_check
      _
    $region27: #{tpu_custom_call.1} parent=1 // pred_check_branch
      %281 = sbr.rel (0) target = $region29
    $region28: #{tpu_custom_call.1} parent=1 // pred_region
      %282 = dma.done [#allocation4], 3200
    $region29: #{tpu_custom_call.1} parent=1 // pred_fallthru
      _
    %283 = vsyncpa [#allocation3], 1
    %284 = vsyncpa [#allocation4], 1

</llo_original>
